<compile_context>
chip_gen: v5e
topology: v5e:2x2
jax: 0.10.0
libtpu: 0.0.40
codegen_flags: <defaults>
</compile_context>

<pallas_src>
import functools

import jax
import jax.numpy as jnp
from jax import lax
from jax.experimental import pallas as pl
from jax.experimental.pallas import tpu as pltpu


def _linear_ln_kernel(x_ref, w_ref, b_ref, g_ref, beta_ref, o_ref, acc_ref,
                      *, eps, mxu_dtype):
    # x_ref: (tile_m, tile_k), w_ref: (N, tile_k)  [native nn.Linear layout],
    # b/g/beta: (1, N), o_ref: (tile_m, N), acc_ref: (tile_m, N) f32 scratch.
    k = pl.program_id(1)

    @pl.when(k == 0)
    def _():
        acc_ref[...] = jnp.zeros_like(acc_ref)

    x = x_ref[...]
    w = w_ref[...]
    if mxu_dtype is not None:
        x = x.astype(mxu_dtype)
        w = w.astype(mxu_dtype)

    # Contract on the last (lane) dim of both operands: (tile_m, tile_k) x (N, tile_k)
    # -> (tile_m, N).  Equivalent to x @ W^T, no transpose materialized.
    acc_ref[...] += lax.dot_general(
        x, w,
        dimension_numbers=(((1,), (1,)), ((), ())),
        preferred_element_type=jnp.float32,
    )

    @pl.when(k == pl.num_programs(1) - 1)
    def _():
        y = acc_ref[...] + b_ref[...].astype(jnp.float32)
        n = y.shape[-1]
        inv_n = jnp.float32(1.0 / n)
        # One-pass statistics: the two lane reductions are independent.
        s1 = jnp.sum(y, axis=-1, keepdims=True)
        s2 = jnp.sum(y * y, axis=-1, keepdims=True)
        mean = s1 * inv_n
        var = s2 * inv_n - mean * mean
        inv = lax.rsqrt(var + eps)
        out = (y - mean) * inv * g_ref[...].astype(jnp.float32) \
              + beta_ref[...].astype(jnp.float32)
        o_ref[...] = out.astype(o_ref.dtype)


def _vmem_budget_bytes():
    try:
        info = pltpu.get_tpu_info()
        cap = int(getattr(info, "vmem_capacity_bytes", 64 << 20))
    except Exception:
        cap = 64 << 20  # conservative fallback (v7x physical VMEM per TC)
    # Leave headroom for double-buffers / semaphores / Mosaic internal scratch:
    # ~48 MiB usable on v7x, ~96 MiB on v5e/v6e.
    return (cap * 3) // 4


def _pick_tiles(M, K, N, in_itemsize, w_itemsize, out_itemsize, budget):
    # tile_k must divide K exactly (ragged blocks on a reduction axis would read
    # garbage into the accumulator), and be lane-aligned when tiled.
    if K % 512 == 0:
        tile_k = 512
    elif K % 256 == 0:
        tile_k = 256
    elif K % 128 == 0:
        tile_k = 128
    else:
        tile_k = K  # small / odd K: single K step

    m_aligned = max(8, ((M + 7) // 8) * 8)
    candidates = [c for c in (512, 256, 128, 64, 32, 16, 8) if c <= m_aligned]
    if not candidates:
        candidates = [8]

    def footprint(tm):
        return (2 * tm * tile_k * in_itemsize      # x block, double-buffered
                + 2 * N * tile_k * w_itemsize      # weight slice, double-buffered
                + 2 * tm * N * out_itemsize        # output block, double-buffered
                + tm * N * 4                       # f32 accumulator scratch
                + 8 * N * 4)                       # bias/gamma/beta (upper bound)

    tile_m = candidates[-1]
    for c in candidates:
        if footprint(c) <= budget:
            tile_m = c
            break
    return tile_m, tile_k


def linear_adapter_forward(x, weight, bias, ln_gamma, ln_beta, *,
                           eps=1e-5, mxu_dtype=None):
    """y = LayerNorm(x @ weight.T + bias) with affine (gamma, beta).

    x:       (..., K)        input
    weight:  (N, K)          nn.Linear weight (native PyTorch layout, NOT transposed)
    bias:    (N,)            nn.Linear bias
    ln_gamma, ln_beta: (N,)  nn.LayerNorm affine params
    mxu_dtype: optional dtype to feed the MXU (e.g. jnp.bfloat16).  Defaults to the
               input dtype; bf16 is picked automatically for <=16-bit inputs.
    returns: (..., N)
    """
    *lead, K = x.shape
    N, K_w = weight.shape
    assert K_w == K, (K_w, K)

    x2d = x.reshape(-1, K)
    M = x2d.shape[0]

    if mxu_dtype is None and jnp.dtype(x.dtype).itemsize <= 2:
        mxu_dtype = jnp.bfloat16  # bf16-native MXUs on every generation

    b2 = bias.reshape(1, N)
    g2 = ln_gamma.reshape(1, N)
    be2 = ln_beta.reshape(1, N)

    in_it = jnp.dtype(x.dtype).itemsize
    w_it = jnp.dtype(weight.dtype).itemsize
    out_it = in_it
    budget = _vmem_budget_bytes()
    tile_m, tile_k = _pick_tiles(M, K, N, in_it, w_it, out_it, budget)

    n_k = max(1, K // tile_k)
    grid = (pl.cdiv(M, tile_m), n_k)

    cost = pl.CostEstimate(
        flops=2 * M * K * N,
        transcendentals=M,  # one rsqrt per row
        bytes_accessed=(M * K * in_it + K * N * w_it
                        + 3 * N * jnp.dtype(bias.dtype).itemsize
                        + M * N * out_it),
    )

    kernel = functools.partial(_linear_ln_kernel, eps=eps, mxu_dtype=mxu_dtype)

    # TODO(synk): if xprof shows exposed weight DMA on v7x, add
    # pipeline_mode=pl.Buffered(3) to the weight BlockSpec below.
    out2d = pl.pallas_call(
        kernel,
        out_shape=jax.ShapeDtypeStruct((M, N), x.dtype),
        grid_spec=pltpu.PrefetchScalarGridSpec(
            num_scalar_prefetch=0,
            grid=grid,
            in_specs=[
                pl.BlockSpec((tile_m, tile_k), lambda i, k: (i, k)),  # x rows
                pl.BlockSpec((N, tile_k), lambda i, k: (0, k)),       # weight (N,K) slice
                pl.BlockSpec((1, N), lambda i, k: (0, 0)),            # bias
                pl.BlockSpec((1, N), lambda i, k: (0, 0)),            # gamma
                pl.BlockSpec((1, N), lambda i, k: (0, 0)),            # beta
            ],
            out_specs=pl.BlockSpec((tile_m, N), lambda i, k: (i, 0)),
            scratch_shapes=[pltpu.VMEM((tile_m, N), jnp.float32)],
        ),
        compiler_params=pltpu.CompilerParams(
            dimension_semantics=("parallel", "arbitrary"),
            vmem_limit_bytes=int(budget),
        ),
        cost_estimate=cost,
    )(x2d, weight, b2, g2, be2)

    return out2d.reshape(*lead, N)


def _reference(x, weight, bias, gamma, beta, eps=1e-5):
    lin = x.astype(jnp.float32) @ weight.astype(jnp.float32).T + bias.astype(jnp.float32)
    mean = lin.mean(axis=-1, keepdims=True)
    var = ((lin - mean) ** 2).mean(axis=-1, keepdims=True)
    return (lin - mean) / jnp.sqrt(var + eps) * gamma.astype(jnp.float32) \
           + beta.astype(jnp.float32)


if __name__ == "__main__":
    key = jax.random.PRNGKey(0)
    k1, k2, k3, k4, k5 = jax.random.split(key, 5)

    # Small shapes consistent with the module: batch=2, seq=8, in_dim=32, out_dim=64.
    B, S, K, N = 2, 8, 32, 64
    x = jax.random.normal(k1, (B, S, K), dtype=jnp.float32)
    weight = jax.random.normal(k2, (N, K), dtype=jnp.float32) * 0.1
    bias = jax.random.normal(k3, (N,), dtype=jnp.float32) * 0.1
    ln_gamma = 1.0 + 0.1 * jax.random.normal(k4, (N,), dtype=jnp.float32)
    ln_beta = 0.1 * jax.random.normal(k5, (N,), dtype=jnp.float32)

    # f32 path (exact module semantics).
    y = linear_adapter_forward(x, weight, bias, ln_gamma, ln_beta)
    jax.block_until_ready(y)
    ref = _reference(x, weight, bias, ln_gamma, ln_beta)
    assert y.shape == ref.shape, (y.shape, ref.shape)
    assert y.dtype == x.dtype
    err = float(jnp.max(jnp.abs(y.astype(jnp.float32) - ref)))
    assert bool(jnp.allclose(y.astype(jnp.float32), ref, atol=3e-5, rtol=3e-5)), err

    # bf16 fast path (bf16 MXU feed, f32 accumulation / LN epilogue).
    xb = x.astype(jnp.bfloat16)
    wb = weight.astype(jnp.bfloat16)
    yb = linear_adapter_forward(xb, wb, bias.astype(jnp.bfloat16),
                                ln_gamma.astype(jnp.bfloat16),
                                ln_beta.astype(jnp.bfloat16))
    jax.block_until_ready(yb)
    ref_b = _reference(xb, wb, bias.astype(jnp.bfloat16),
                       ln_gamma.astype(jnp.bfloat16), ln_beta.astype(jnp.bfloat16))
    assert yb.shape == ref_b.shape and yb.dtype == jnp.bfloat16
    assert bool(jnp.allclose(yb.astype(jnp.float32), ref_b, atol=1e-1, rtol=1e-1))

    print("KERNEL_OK")
</pallas_src>

<mosaic_0001>
module attributes {stable_mosaic.version = 11 : i64} {
  func.func @_linear_ln_kernel(%arg0: i32, %arg1: i32, %arg2: memref<16x32xf32, #tpu.memory_space<vmem>>, %arg3: memref<64x32xf32, #tpu.memory_space<vmem>>, %arg4: memref<1x64xf32, #tpu.memory_space<vmem>>, %arg5: memref<1x64xf32, #tpu.memory_space<vmem>>, %arg6: memref<1x64xf32, #tpu.memory_space<vmem>>, %arg7: memref<16x64xf32, #tpu.memory_space<vmem>>, %arg8: memref<16x64xf32, #tpu.memory_space<vmem>>) attributes {dimension_semantics = [#tpu.dimension_semantics<parallel>, #tpu.dimension_semantics<arbitrary>], iteration_bounds = array<i64: 1, 1>, scalar_prefetch = 0 : i64, scratch_operands = 1 : i64, tpu.core_type = #tpu.core_type<tc>, window_params = [{transform_indices = @transform_0, window_bounds = array<i64: 16, 32>}, {transform_indices = @transform_1, window_bounds = array<i64: 64, 32>}, {pipeline_mode = #tpu.pipeline_mode<synchronous>, transform_indices = @transform_2, window_bounds = array<i64: 1, 64>}, {pipeline_mode = #tpu.pipeline_mode<synchronous>, transform_indices = @transform_3, window_bounds = array<i64: 1, 64>}, {pipeline_mode = #tpu.pipeline_mode<synchronous>, transform_indices = @transform_4, window_bounds = array<i64: 1, 64>}, {transform_indices = @transform_5, window_bounds = array<i64: 16, 64>}]} {
    %c0_i32 = arith.constant 0 : i32
    %0 = arith.cmpi eq, %arg1, %c0_i32 : i32
    %1 = arith.extui %0 : i1 to i32
    %c0_i32_0 = arith.constant 0 : i32
    %2 = arith.cmpi ne, %1, %c0_i32_0 : i32
    scf.if %2 {
      %cst_10 = arith.constant 0.000000e+00 : f32
      %12 = vector.broadcast %cst_10 : f32 to vector<16x64xf32>
      %c0_11 = arith.constant 0 : index
      %c0_12 = arith.constant 0 : index
      %13 = vector.load %arg8[%c0_11, %c0_12] : memref<16x64xf32, #tpu.memory_space<vmem>>, vector<16x64xf32>
      tpu.vector_store %arg8[%c0_11, %c0_12], %12 {strides = array<i32>} : memref<16x64xf32, #tpu.memory_space<vmem>>, vector<16x64xf32>,
    } else {
    }
    %c0 = arith.constant 0 : index
    %c0_1 = arith.constant 0 : index
    %3 = vector.load %arg2[%c0, %c0_1] : memref<16x32xf32, #tpu.memory_space<vmem>>, vector<16x32xf32>
    %c0_2 = arith.constant 0 : index
    %c0_3 = arith.constant 0 : index
    %4 = vector.load %arg3[%c0_2, %c0_3] : memref<64x32xf32, #tpu.memory_space<vmem>>, vector<64x32xf32>
    %c0_4 = arith.constant 0 : index
    %c0_5 = arith.constant 0 : index
    %5 = vector.load %arg8[%c0_4, %c0_5] : memref<16x64xf32, #tpu.memory_space<vmem>>, vector<16x64xf32>
    %cst = arith.constant dense<0.000000e+00> : vector<16x64xf32>
    %6 = tpu.matmul %3, %4, %cst {dimension_numbers = #tpu.dot_dimension_numbers<[1], [1], [0], [0], [0, 0, 1, 0], [], []>} : vector<16x32xf32>, vector<64x32xf32>, vector<16x64xf32> -> vector<16x64xf32>
    %7 = arith.addf %5, %6 : vector<16x64xf32>
    %c0_6 = arith.constant 0 : index
    %c0_7 = arith.constant 0 : index
    %8 = vector.load %arg8[%c0_6, %c0_7] : memref<16x64xf32, #tpu.memory_space<vmem>>, vector<16x64xf32>
    tpu.vector_store %arg8[%c0_6, %c0_7], %7 {strides = array<i32>} : memref<16x64xf32, #tpu.memory_space<vmem>>, vector<16x64xf32>,
    %c0_i32_8 = arith.constant 0 : i32
    %9 = arith.cmpi eq, %arg1, %c0_i32_8 : i32
    %10 = arith.extui %9 : i1 to i32
    %c0_i32_9 = arith.constant 0 : i32
    %11 = arith.cmpi ne, %10, %c0_i32_9 : i32
    scf.if %11 {
      %c0_10 = arith.constant 0 : index
      %c0_11 = arith.constant 0 : index
      %12 = vector.load %arg8[%c0_10, %c0_11] : memref<16x64xf32, #tpu.memory_space<vmem>>, vector<16x64xf32>
      %c0_12 = arith.constant 0 : index
      %c0_13 = arith.constant 0 : index
      %13 = vector.load %arg4[%c0_12, %c0_13] : memref<1x64xf32, #tpu.memory_space<vmem>>, vector<1x64xf32>
      %14 = vector.broadcast %13 : vector<1x64xf32> to vector<16x64xf32>
      %15 = arith.addf %12, %14 : vector<16x64xf32>
      %cst_14 = arith.constant dense<0.000000e+00> : vector<16xf32>
      %16 = vector.multi_reduction <add>, %15, %cst_14 [1] : vector<16x64xf32> to vector<16xf32>
      %17 = vector.shape_cast %16 : vector<16xf32> to vector<16x1xf32>
      %18 = arith.mulf %15, %15 : vector<16x64xf32>
      %cst_15 = arith.constant dense<0.000000e+00> : vector<16xf32>
      %19 = vector.multi_reduction <add>, %18, %cst_15 [1] : vector<16x64xf32> to vector<16xf32>
      %20 = vector.shape_cast %19 : vector<16xf32> to vector<16x1xf32>
      %cst_16 = arith.constant 1.562500e-02 : f32
      %21 = vector.broadcast %cst_16 : f32 to vector<16x1xf32>
      %22 = arith.mulf %17, %21 : vector<16x1xf32>
      %cst_17 = arith.constant 1.562500e-02 : f32
      %23 = vector.broadcast %cst_17 : f32 to vector<16x1xf32>
      %24 = arith.mulf %20, %23 : vector<16x1xf32>
      %25 = arith.mulf %22, %22 : vector<16x1xf32>
      %26 = arith.subf %24, %25 : vector<16x1xf32>
      %cst_18 = arith.constant 9.99999974E-6 : f32
      %27 = vector.broadcast %cst_18 : f32 to vector<16x1xf32>
      %28 = arith.addf %26, %27 : vector<16x1xf32>
      %29 = math.rsqrt %28 : vector<16x1xf32>
      %30 = vector.broadcast %22 : vector<16x1xf32> to vector<16x64xf32>
      %31 = arith.subf %15, %30 : vector<16x64xf32>
      %32 = vector.broadcast %29 : vector<16x1xf32> to vector<16x64xf32>
      %33 = arith.mulf %31, %32 : vector<16x64xf32>
      %c0_19 = arith.constant 0 : index
      %c0_20 = arith.constant 0 : index
      %34 = vector.load %arg5[%c0_19, %c0_20] : memref<1x64xf32, #tpu.memory_space<vmem>>, vector<1x64xf32>
      %35 = vector.broadcast %34 : vector<1x64xf32> to vector<16x64xf32>
      %36 = arith.mulf %33, %35 : vector<16x64xf32>
      %c0_21 = arith.constant 0 : index
      %c0_22 = arith.constant 0 : index
      %37 = vector.load %arg6[%c0_21, %c0_22] : memref<1x64xf32, #tpu.memory_space<vmem>>, vector<1x64xf32>
      %38 = vector.broadcast %37 : vector<1x64xf32> to vector<16x64xf32>
      %39 = arith.addf %36, %38 : vector<16x64xf32>
      %c0_23 = arith.constant 0 : index
      %c0_24 = arith.constant 0 : index
      %40 = vector.load %arg7[%c0_23, %c0_24] : memref<16x64xf32, #tpu.memory_space<vmem>>, vector<16x64xf32>
      tpu.vector_store %arg7[%c0_23, %c0_24], %39 {strides = array<i32>} : memref<16x64xf32, #tpu.memory_space<vmem>>, vector<16x64xf32>,
    } else {
    }
    return
  }
  func.func @transform_0(%arg0: i32, %arg1: i32) -> (i32, i32) {
    %c0_i32 = arith.constant 0 : i32
    return %arg0, %arg1 : i32, i32
  }
  func.func @transform_1(%arg0: i32, %arg1: i32) -> (i32, i32) {
    %c0_i32 = arith.constant 0 : i32
    %c0_i32_0 = arith.constant 0 : i32
    return %c0_i32, %arg1 : i32, i32
  }
  func.func @transform_2(%arg0: i32, %arg1: i32) -> (i32, i32) {
    %c0_i32 = arith.constant 0 : i32
    %c0_i32_0 = arith.constant 0 : i32
    %c0_i32_1 = arith.constant 0 : i32
    return %c0_i32, %c0_i32_0 : i32, i32
  }
  func.func @transform_3(%arg0: i32, %arg1: i32) -> (i32, i32) {
    %c0_i32 = arith.constant 0 : i32
    %c0_i32_0 = arith.constant 0 : i32
    %c0_i32_1 = arith.constant 0 : i32
    return %c0_i32, %c0_i32_0 : i32, i32
  }
  func.func @transform_4(%arg0: i32, %arg1: i32) -> (i32, i32) {
    %c0_i32 = arith.constant 0 : i32
    %c0_i32_0 = arith.constant 0 : i32
    %c0_i32_1 = arith.constant 0 : i32
    return %c0_i32, %c0_i32_0 : i32, i32
  }
  func.func @transform_5(%arg0: i32, %arg1: i32) -> (i32, i32) {
    %c0_i32 = arith.constant 0 : i32
    %c0_i32_0 = arith.constant 0 : i32
    return %arg0, %c0_i32 : i32, i32
  }
}

</mosaic_0001>

<llo_original>
// kernel: tpu_custom_call.1
$region0: #{tpu_custom_call.1}
  #allocation0 [shape = 'u32[]', space=smem, size = 0x4, offset = 0x4, fixed_abs, tag = 'smem constant byte address 0x4 - core index']
  #allocation1 [shape = 'u32[72,128]{1,0:T(1,128)}', space=vmem, size = 0x9000, scoped, tag = 'internal scratch']
  #allocation2 [shape = 'f32[16,64]{1,0:T(8,128)}', space=vmem, size = 0x2000, scoped, tag = 'scratch operand']
  %s0 = inlined_call_operand.vmem [shape: f32[16,32], index: 0, kind: input, shape index: {}]
  %s1 = inlined_call_operand.vmem [shape: f32[64,32], index: 1, kind: input, shape index: {}]
  %s2 = inlined_call_operand.vmem [shape: f32[1,64], index: 2, kind: input, shape index: {}]
  %s3 = inlined_call_operand.vmem [shape: f32[1,64], index: 3, kind: input, shape index: {}]
  %s4 = inlined_call_operand.vmem [shape: f32[1,64], index: 4, kind: input, shape index: {}]
  %s5 = inlined_call_operand.hbm [shape: f32[16,64], index: 5, kind: output, shape index: {}]
  %s6 = sld [smem:[#allocation0]]
  $region38: #{tpu_custom_call.1} parent=0
    _
  %s8 = ssub.s32 1, %s6
  %s9 = scalar_select 0, %s8, %s6
  $region1: #{tpu_custom_call.1} parent=0
    #allocation3 [shape = 'u8[8192]{0}', space=vmem, size = 0x2000, scoped, tag = 'output window, operand 0, single buffered']
    #allocation4 [shape = 's32[1]{0}', space=sflag, size = 0x4, scoped, tag = 'scoped memory for tpu_custom_call.1']
    %10 = vsyncpa [#allocation4], 0
    // Predicated region
    $region2: #{tpu_custom_call.1} parent=1 // pred_check
      _
    $region3: #{tpu_custom_call.1} parent=1 // pred_check_branch
      %12 = sbr.rel (0) target = $region5
    $region4: #{tpu_custom_call.1} parent=1 // pred_region
      _
    $region5: #{tpu_custom_call.1} parent=1 // pred_fallthru
      _
    // Predicated region
    $region6: #{tpu_custom_call.1} parent=1 // pred_check
      _
    $region7: #{tpu_custom_call.1} parent=1 // pred_check_branch
      %14 = sbr.rel (0) target = $region9
    $region8: #{tpu_custom_call.1} parent=1 // pred_region
      _
    $region9: #{tpu_custom_call.1} parent=1 // pred_fallthru
      _
    // Predicated region
    $region10: #{tpu_custom_call.1} parent=1 // pred_check
      _
    $region11: #{tpu_custom_call.1} parent=1 // pred_check_branch
      %16 = sbr.rel (0) target = $region13
    $region12: #{tpu_custom_call.1} parent=1 // pred_region
      _
    $region13: #{tpu_custom_call.1} parent=1 // pred_fallthru
      _
    // Predicated region
    $region14: #{tpu_custom_call.1} parent=1 // pred_check
      _
    $region15: #{tpu_custom_call.1} parent=1 // pred_check_branch
      %18 = sbr.rel (0) target = $region17
    $region16: #{tpu_custom_call.1} parent=1 // pred_region
      _
    $region17: #{tpu_custom_call.1} parent=1 // pred_fallthru
      _
    // Predicated region
    $region18: #{tpu_custom_call.1} parent=1 // pred_check
      _
    $region19: #{tpu_custom_call.1} parent=1 // pred_check_branch
      %20 = sbr.rel (0) target = $region21
    $region20: #{tpu_custom_call.1} parent=1 // pred_region
      _
    $region21: #{tpu_custom_call.1} parent=1 // pred_fallthru
      _
    %p21 = scmp.eq.s32.totalorder 0, 0
    // Predicated region
    $region22: #{tpu_custom_call.1} parent=1 // pred_check
      %p22 = pneg %p21
    $region23: #{tpu_custom_call.1} parent=1 // pred_check_branch
      %24 = sbr.rel (%p22) target = $region25
    $region24: #{tpu_custom_call.1} parent=1 // pred_region
      %vm25 = vcmask 523264
      %26 = vst.msk [vmem:[#allocation2] sm:$0xff] %vm25, 0.0
      %27 = vst.msk [vmem:[#allocation2 + $0x8] sm:$0xff] %vm25, 0.0
    $region25: #{tpu_custom_call.1} parent=1 // pred_fallthru
      _
    %v28 = vld [vmem:[%s0] sm:$0xff]
    %v29 = vld [vmem:[%s0 + $0x8] sm:$0xff]
    %v30 = vld [vmem:[%s1] sm:$0xff]
    %v31 = vld [vmem:[%s1 + $0x8] sm:$0xff]
    %v32 = vld [vmem:[%s1 + $0x10] sm:$0xff]
    %v33 = vld [vmem:[%s1 + $0x18] sm:$0xff]
    %v34 = vld [vmem:[%s1 + $0x20] sm:$0xff]
    %v35 = vld [vmem:[%s1 + $0x28] sm:$0xff]
    %v36 = vld [vmem:[%s1 + $0x30] sm:$0xff]
    %v37 = vld [vmem:[%s1 + $0x38] sm:$0xff]
    %v38 = vld [vmem:[#allocation2] sm:$0xff]
    %v39 = vld [vmem:[#allocation2 + $0x8] sm:$0xff]
    %vm40 = vcmask 261120
    %v42 = vsel %vm40, %v28, 0
    %v45 = vsel %vm40, %v29, 0
    %v48 = vsel %vm40, %v30, 0
    %v51 = vsel %vm40, %v31, 0
    %v54 = vsel %vm40, %v32, 0
    %v57 = vsel %vm40, %v33, 0
    %v60 = vsel %vm40, %v34, 0
    %v63 = vsel %vm40, %v35, 0
    %v66 = vsel %vm40, %v36, 0
    %v69 = vsel %vm40, %v37, 0
    %71 = vmatpush.xpose.msra.mxu0 0.0
    %72 = vmatpush.xpose.msra.mxu0 0.0
    %73 = vmatpush.xpose.msra.mxu0 0.0
    %74 = vmatpush.xpose.msra.mxu0 0.0
    %75 = vmatpush.xpose.msra.mxu0 0.0
    %76 = vmatpush.xpose.msra.mxu0 0.0
    %77 = vmatpush.xpose.msra.mxu0 0.0
    %78 = vmatpush.xpose.msra.mxu0 0.0
    %79 = vmatpush.xpose.msra.mxu0 %v69
    %80 = vmatpush.xpose.msra.mxu0 %v66
    %81 = vmatpush.xpose.msra.mxu0 %v63
    %82 = vmatpush.xpose.msra.mxu0 %v60
    %83 = vmatpush.xpose.msra.mxu0 %v57
    %84 = vmatpush.xpose.msra.mxu0 %v54
    %85 = vmatpush.xpose.msra.mxu0 %v51
    %86 = vmatpush.xpose.msra.mxu0 %v48
    %87 = vmatmul.f32.gmra.mxu0 %v42
    %v88 = vpop.f32.mrf.mxu0
    %v89 = vadd.f32 0.0, %v88
    %90 = vmatmul.f32.gmra.mxu0 %v45
    %v91 = vpop.f32.mrf.mxu0
    %v92 = vadd.f32 0.0, %v91
    %93 = vdwg.mxu0
    %v94 = vadd.f32 %v38, %v89
    %v95 = vadd.f32 %v39, %v92
    %vm96 = vcmask 523264
    %97 = vst.msk [vmem:[#allocation2] sm:$0xff] %vm96, %v94
    %98 = vst.msk [vmem:[#allocation2 + $0x8] sm:$0xff] %vm96, %v95
    // Predicated region
    $region26: #{tpu_custom_call.1} parent=1 // pred_check
      %p99 = pneg %p21
    $region27: #{tpu_custom_call.1} parent=1 // pred_check_branch
      %101 = sbr.rel (%p99) target = $region29
    $region28: #{tpu_custom_call.1} parent=1 // pred_region
      %v102 = vld [vmem:[#allocation2] sm:$0xff]
      %v103 = vld [vmem:[#allocation2 + $0x8] sm:$0xff]
      %v104 = vld [vmem:[%s2] sm:$0x1]
      %v106 = vperm.slane %v104, 0
      %v108 = vadd.f32 %v102, %v106
      %v109 = vadd.f32 %v103, %v106
      %v110 = vsel %vm96, %v108, 0.0
      %111 = vadd.xlane.f32.xlu0 %v110
      %v112 = vpop.xlane.xlu0 %111
      %v113 = vsel %vm96, %v109, 0.0
      %114 = vadd.xlane.f32.xlu0 %v113
      %v115 = vpop.xlane.xlu0 %114
      %v116 = vmul.f32 %v108, %v108
      %v117 = vmul.f32 %v109, %v109
      %v118 = vsel %vm96, %v116, 0.0
      %119 = vadd.xlane.f32.xlu0 %v118
      %v120 = vpop.xlane.xlu0 %119
      %v121 = vsel %vm96, %v117, 0.0
      %122 = vadd.xlane.f32.xlu0 %v121
      %v123 = vpop.xlane.xlu0 %122
      %v124 = vmul.f32 %v112, 0.015625
      %v125 = vmul.f32 %v115, 0.015625
      %v126 = vmul.f32 %v120, 0.015625
      %v127 = vmul.f32 %v123, 0.015625
      %v128 = vmul.f32 %v124, %v124
      %v129 = vmul.f32 %v125, %v125
      %v130 = vsub.f32 %v126, %v128
      %v131 = vsub.f32 %v127, %v129
      %v132 = vadd.f32 %v130, 1e-05
      %v133 = vadd.f32 %v131, 1e-05
      %v134 = vrsqrt.pop %v132
      %v135 = vmul.f32 %v134, %v132
      %v136 = vmul.f32 %v135, %v134
      %v137 = vmul.f32 0.5, %v136
      %v138 = vsub.f32 1.5, %v137
      %v139 = vmul.f32 %v134, %v138
      %vm140 = vweird.f32 %v132
      %vm141 = vweird.f32 %v134
      %vm142 = vmor %vm140, %vm141
      %v143 = vsel %vm142, %v134, %v139
      %v144 = vrsqrt.pop %v133
      %v145 = vmul.f32 %v144, %v133
      %v146 = vmul.f32 %v145, %v144
      %v147 = vmul.f32 0.5, %v146
      %v148 = vsub.f32 1.5, %v147
      %v149 = vmul.f32 %v144, %v148
      %vm150 = vweird.f32 %v133
      %vm151 = vweird.f32 %v144
      %vm152 = vmor %vm150, %vm151
      %v153 = vsel %vm152, %v144, %v149
      %v154 = vsub.f32 %v108, %v124
      %v155 = vsub.f32 %v109, %v125
      %v156 = vmul.f32 %v154, %v143
      %v157 = vmul.f32 %v155, %v153
      %v158 = vld [vmem:[%s3] sm:$0x1]
      %v160 = vperm.slane %v158, 0
      %v162 = vmul.f32 %v156, %v160
      %v163 = vmul.f32 %v157, %v160
      %v164 = vld [vmem:[%s4] sm:$0x1]
      %v166 = vperm.slane %v164, 0
      %v168 = vadd.f32 %v162, %v166
      %v169 = vadd.f32 %v163, %v166
      %170 = vst.msk [vmem:[#allocation3] sm:$0xff] %vm96, %v168
      %171 = vst.msk [vmem:[#allocation3 + $0x8] sm:$0xff] %vm96, %v169
    $region29: #{tpu_custom_call.1} parent=1 // pred_fallthru
      _
    // Predicated region
    $region30: #{tpu_custom_call.1} parent=1 // pred_check
      _
    $region31: #{tpu_custom_call.1} parent=1 // pred_check_branch
      %173 = sbr.rel (0) target = $region33
    $region32: #{tpu_custom_call.1} parent=1 // pred_region
      %175 = vsyncadd [#allocation4], 0
      %s176 = sshll.u32 [#allocation3], 4
      %s177 = int_to_ptr.vmem [resolvable:$true] %s176
      %s178 = sshll.u32 %s5, 4
      %s179 = int_to_ptr.hbm [resolvable:$true] %s178
      %184 = dma.vmem_to_hbm [thread:$0]  %s177, 256, %s179, [#allocation4], 128, 128, 8
    $region33: #{tpu_custom_call.1} parent=1 // pred_fallthru
      _
    // Predicated region
    $region34: #{tpu_custom_call.1} parent=1 // pred_check
      _
    $region35: #{tpu_custom_call.1} parent=1 // pred_check_branch
      %186 = sbr.rel (0) target = $region37
    $region36: #{tpu_custom_call.1} parent=1 // pred_region
      %188 = dma.done [#allocation4], 256
    $region37: #{tpu_custom_call.1} parent=1 // pred_fallthru
      _
    %189 = vsyncpa [#allocation4], 1

</llo_original>
